<compile_context>
chip_gen: v7x
topology: tpu7x:2x2x1
jax: 0.10.0
libtpu: 0.0.40
codegen_flags: <defaults>
</compile_context>

<pallas_src>
import functools

import jax
import jax.numpy as jnp
from jax.experimental import pallas as pl
from jax.experimental.pallas import tpu as pltpu

S_SCALE = 64.0     # CosFace scale s
M_MARGIN = 0.35    # CosFace margin m
EPS = 1e-12        # F.normalize eps semantics: x / max(||x||, eps)
NEG_BIG = -1e30    # mask value for padded class columns


def _round_up(x, m):
    return (x + m - 1) // m * m


# ----------------------------- Pallas kernels ------------------------------ #

def backbone_kernel(p_ref, cw_ref, cb_ref, fw_ref, fb_ref, emb_ref, *, normalize):
    """Per-image conv-as-matmul -> ReLU -> GAP (ones matmul) -> fc [-> l2norm].

    p_ref : (1, M, Kp)  bf16  im2col patches of one image (M = Ho*Wo)
    cw_ref: (Kp, Fp)    bf16  conv weight, im2col layout, zero padded
    cb_ref: (1, Fp)     f32
    fw_ref: (Fp, Ep)    bf16  fc weight, pre-scaled by 1/M (GAP folded in)
    fb_ref: (1, Ep)     f32
    emb_ref: (1, 1, Ep) f32
    """
    patches = p_ref[0]                                           # (M, Kp) bf16
    conv = jnp.dot(patches, cw_ref[...],
                   preferred_element_type=jnp.float32)           # (M, Fp) f32 acc
    conv = jnp.maximum(conv + cb_ref[...], 0.0)                  # bias + ReLU

    # Global average pool as a ones-matmul (rides the MXU, no XLU reduce);
    # the 1/M scale is folded into fw_ref by the wrapper.
    m_rows = patches.shape[0]
    ones = jnp.ones((1, m_rows), dtype=jnp.bfloat16)
    pooled = jnp.dot(ones, conv.astype(jnp.bfloat16),
                     preferred_element_type=jnp.float32)         # (1, Fp)

    emb = jnp.dot(pooled.astype(jnp.bfloat16), fw_ref[...],
                  preferred_element_type=jnp.float32) + fb_ref[...]  # (1, Ep)

    if normalize:  # fused F.normalize for the return_embeddings path
        inv = jax.lax.rsqrt(
            jnp.maximum(jnp.sum(emb * emb, axis=1, keepdims=True), EPS * EPS))
        emb = emb * inv

    emb_ref[0] = emb


def cosface_head_kernel(emb_ref, wt_ref, lab_ref, loss_ref, acc_ref,
                        m_run, l_run, tgt_run, best_val, best_idx,
                        *, num_classes, class_block):
    """Streaming CosFace head over class chunks.

    emb_ref : (B, Ep)   f32  un-normalized embeddings (padded cols are zero)
    wt_ref  : (Ep, TC)  bf16 class-weight chunk, pre-transposed (classes on lanes)
    lab_ref : (B, 1)    int32
    loss_ref, acc_ref: (1, 1) f32
    scratch : running max / sum-exp / target-logit / best-logit / best-index (B,1)
    """
    c = pl.program_id(0)
    nsteps = pl.num_programs(0)

    @pl.when(c == 0)
    def _init():
        m_run[...] = jnp.full_like(m_run, NEG_BIG)
        l_run[...] = jnp.zeros_like(l_run)
        tgt_run[...] = jnp.zeros_like(tgt_run)
        best_val[...] = jnp.full_like(best_val, NEG_BIG)
        best_idx[...] = jnp.full_like(best_idx, num_classes)

    # Normalize embeddings (rsqrt -> EUP) and this chunk of class weights.
    emb = emb_ref[...]
    inv_e = jax.lax.rsqrt(
        jnp.maximum(jnp.sum(emb * emb, axis=1, keepdims=True), EPS * EPS))
    emb_n = (emb * inv_e).astype(jnp.bfloat16)

    w = wt_ref[...].astype(jnp.float32)                           # (Ep, TC)
    inv_w = jax.lax.rsqrt(
        jnp.maximum(jnp.sum(w * w, axis=0, keepdims=True), EPS * EPS))
    w_n = (w * inv_w).astype(jnp.bfloat16)

    # cosine similarity chunk on the MXU: lane-dense (B, TC) result.
    cos = jnp.dot(emb_n, w_n, preferred_element_type=jnp.float32)

    labels = lab_ref[...]                                         # (B, 1) int32
    col = jax.lax.broadcasted_iota(jnp.int32, cos.shape, 1) + c * class_block
    is_label = col == labels

    # CosFace margin applied only on the label column (no f32 one-hot temp),
    # padded class columns masked out.
    logits = S_SCALE * cos - jnp.where(is_label, S_SCALE * M_MARGIN, 0.0)
    logits = jnp.where(col < num_classes, logits, NEG_BIG)

    # Online logsumexp accumulation.
    chunk_max = jnp.max(logits, axis=1, keepdims=True)            # (B, 1)
    m_new = jnp.maximum(m_run[...], chunk_max)
    scale = jnp.exp(m_run[...] - m_new)
    l_run[...] = scale * l_run[...] + jnp.sum(jnp.exp(logits - m_new),
                                              axis=1, keepdims=True)
    m_run[...] = m_new

    # Target (label-column) logit: label falls in exactly one chunk.
    tgt_run[...] = tgt_run[...] + jnp.sum(jnp.where(is_label, logits, 0.0),
                                          axis=1, keepdims=True)

    # Running first-max argmax (reuses chunk_max; strict '>' keeps earliest index).
    chunk_arg = jnp.min(jnp.where(logits == chunk_max, col, num_classes),
                        axis=1, keepdims=True)
    better = chunk_max > best_val[...]
    best_idx[...] = jnp.where(better, chunk_arg, best_idx[...])
    best_val[...] = jnp.where(better, chunk_max, best_val[...])

    @pl.when(c == nsteps - 1)
    def _finalize():
        b = emb.shape[0]
        lse = m_run[...] + jnp.log(l_run[...])
        nll = lse - tgt_run[...]                                  # (B, 1)
        loss_ref[...] = jnp.sum(nll, axis=0, keepdims=True) / b
        correct = (best_idx[...] == labels).astype(jnp.float32)
        acc_ref[...] = jnp.sum(correct, axis=0, keepdims=True) / b


# ------------------------------ JAX wrapper -------------------------------- #

def init_params(key, in_ch, conv_ch, emb_dim, num_classes, ksize=3):
    k1, k2, k3 = jax.random.split(key, 3)
    return {
        "conv_w": 0.1 * jax.random.normal(k1, (ksize, ksize, in_ch, conv_ch), jnp.float32),
        "conv_b": jnp.zeros((1, conv_ch), jnp.float32),
        "fc_w":   0.1 * jax.random.normal(k2, (conv_ch, emb_dim), jnp.float32),
        "fc_b":   jnp.zeros((1, emb_dim), jnp.float32),
        "cls_w":  0.1 * jax.random.normal(k3, (num_classes, emb_dim), jnp.float32),
    }


def _backbone(x_nchw, params, normalize):
    """Returns embeddings padded to (B, Ep) f32 (padded columns are zero)."""
    x = jnp.transpose(x_nchw, (0, 2, 3, 1)).astype(jnp.float32)   # NCHW -> NHWC
    B, H, W, C = x.shape
    KH, KW, _, F = params["conv_w"].shape
    Ho, Wo = H - KH + 1, W - KW + 1
    M = Ho * Wo

    # im2col in the wrapper (layout plumbing only); kernel sees one big matmul.
    cols = []
    for kh in range(KH):
        for kw in range(KW):
            cols.append(x[:, kh:kh + Ho, kw:kw + Wo, :])
    patches = jnp.concatenate(cols, axis=-1).reshape(B, M, KH * KW * C)

    K = KH * KW * C
    Kp = _round_up(K, 128)
    Fp = _round_up(F, 128)
    E = params["fc_w"].shape[1]
    Ep = _round_up(E, 128)

    patches_p = jnp.pad(patches, ((0, 0), (0, 0), (0, Kp - K))).astype(jnp.bfloat16)
    cw_p = jnp.pad(params["conv_w"].reshape(K, F),
                   ((0, Kp - K), (0, Fp - F))).astype(jnp.bfloat16)
    cb_p = jnp.pad(params["conv_b"], ((0, 0), (0, Fp - F))).astype(jnp.float32)
    fw_p = (jnp.pad(params["fc_w"], ((0, Fp - F), (0, Ep - E))) / M).astype(jnp.bfloat16)
    fb_p = jnp.pad(params["fc_b"], ((0, 0), (0, Ep - E))).astype(jnp.float32)

    kernel = functools.partial(backbone_kernel, normalize=normalize)
    emb_p = pl.pallas_call(
        kernel,
        out_shape=jax.ShapeDtypeStruct((B, 1, Ep), jnp.float32),
        grid_spec=pltpu.PrefetchScalarGridSpec(
            num_scalar_prefetch=0,
            grid=(B,),
            in_specs=[
                pl.BlockSpec((1, M, Kp), lambda b: (b, 0, 0)),
                pl.BlockSpec((Kp, Fp), lambda b: (0, 0)),
                pl.BlockSpec((1, Fp), lambda b: (0, 0)),
                pl.BlockSpec((Fp, Ep), lambda b: (0, 0)),
                pl.BlockSpec((1, Ep), lambda b: (0, 0)),
            ],
            out_specs=pl.BlockSpec((1, 1, Ep), lambda b: (b, 0, 0)),
        ),
        compiler_params=pltpu.CompilerParams(
            dimension_semantics=("parallel",),          # shards over v7x's 2 TCs
            vmem_limit_bytes=32 * 1024 * 1024,
        ),
    )(patches_p, cw_p, cb_p, fw_p, fb_p)
    return emb_p.reshape(B, Ep)


def _cosface_head(emb_p, cls_w, labels):
    B, Ep = emb_p.shape
    NC, E = cls_w.shape
    NCp = _round_up(NC, 128)
    TCL = 128                                            # class-chunk (lane-dense)

    # Pre-transpose so the cosine matmul contracts rhs dim 0 (classes on lanes).
    wt = jnp.pad(cls_w.T, ((0, Ep - E), (0, NCp - NC))).astype(jnp.bfloat16)
    lab2d = labels.reshape(B, 1).astype(jnp.int32)

    kernel = functools.partial(cosface_head_kernel,
                               num_classes=NC, class_block=TCL)
    loss, acc = pl.pallas_call(
        kernel,
        out_shape=(jax.ShapeDtypeStruct((1, 1), jnp.float32),
                   jax.ShapeDtypeStruct((1, 1), jnp.float32)),
        grid_spec=pltpu.PrefetchScalarGridSpec(
            num_scalar_prefetch=0,
            grid=(NCp // TCL,),
            in_specs=[
                pl.BlockSpec((B, Ep), lambda c: (0, 0)),
                pl.BlockSpec((Ep, TCL), lambda c: (0, c)),
                pl.BlockSpec((B, 1), lambda c: (0, 0)),
            ],
            out_specs=(pl.BlockSpec((1, 1), lambda c: (0, 0)),
                       pl.BlockSpec((1, 1), lambda c: (0, 0))),
            scratch_shapes=[
                pltpu.VMEM((B, 1), jnp.float32),   # running max
                pltpu.VMEM((B, 1), jnp.float32),   # running sum-exp
                pltpu.VMEM((B, 1), jnp.float32),   # target logit
                pltpu.VMEM((B, 1), jnp.float32),   # best logit
                pltpu.VMEM((B, 1), jnp.int32),     # best index
            ],
        ),
        compiler_params=pltpu.CompilerParams(
            dimension_semantics=("arbitrary",),          # class-reduction axis
            vmem_limit_bytes=32 * 1024 * 1024,
        ),
    )(emb_p, wt, lab2d)
    return loss[0, 0], acc[0, 0]


def singletask_forward(x_nchw, labels, params, return_embeddings=False):
    """Mirror of Singletask.forward: normalized embeddings, or (loss, accuracy)."""
    if return_embeddings:
        E = params["fc_w"].shape[1]
        emb_p = _backbone(x_nchw, params, normalize=True)   # l2norm fused in kernel
        return emb_p[:, :E]
    emb_p = _backbone(x_nchw, params, normalize=False)
    return _cosface_head(emb_p, params["cls_w"], labels)


# --------------------------------- main ------------------------------------ #

if __name__ == "__main__":
    key = jax.random.PRNGKey(0)
    kx, kl, kp = jax.random.split(key, 3)

    # Small synthetic shapes (module defaults 512/500 scaled down for the demo).
    B, C, H, W = 8, 4, 16, 16
    CONV_CH, EMB, NCLS = 32, 32, 16

    x = jax.random.normal(kx, (B, C, H, W), jnp.float32)
    labels = jax.random.randint(kl, (B,), 0, NCLS, jnp.int32)
    params = init_params(kp, C, CONV_CH, EMB, NCLS)

    loss, acc = jax.block_until_ready(singletask_forward(x, labels, params))
    emb_n = jax.block_until_ready(
        singletask_forward(x, labels, params, return_embeddings=True))

    assert jnp.isfinite(loss) and jnp.isfinite(acc)
    assert 0.0 <= float(acc) <= 1.0
    assert emb_n.shape == (B, EMB)
    # normalized embeddings should have unit L2 norm
    assert jnp.allclose(jnp.linalg.norm(emb_n, axis=1), 1.0, atol=1e-4)

    print("KERNEL_OK")
</pallas_src>

<mosaic_0001>
module attributes {stable_mosaic.version = 11 : i64} {
  func.func @backbone_kernel(%arg0: i32, %arg1: memref<1x196x128xbf16, #tpu.memory_space<vmem>>, %arg2: memref<128x128xbf16, #tpu.memory_space<vmem>>, %arg3: memref<1x128xf32, #tpu.memory_space<vmem>>, %arg4: memref<128x128xbf16, #tpu.memory_space<vmem>>, %arg5: memref<1x128xf32, #tpu.memory_space<vmem>>, %arg6: memref<1x1x128xf32, #tpu.memory_space<vmem>>) attributes {dimension_semantics = [#tpu.dimension_semantics<parallel>], iteration_bounds = array<i64: 8>, scalar_prefetch = 0 : i64, scratch_operands = 0 : i64, tpu.core_type = #tpu.core_type<tc>, window_params = [{transform_indices = @transform_0, window_bounds = array<i64: 1, 196, 128>}, {pipeline_mode = #tpu.pipeline_mode<synchronous>, transform_indices = @transform_1, window_bounds = array<i64: 128, 128>}, {pipeline_mode = #tpu.pipeline_mode<synchronous>, transform_indices = @transform_2, window_bounds = array<i64: 1, 128>}, {pipeline_mode = #tpu.pipeline_mode<synchronous>, transform_indices = @transform_3, window_bounds = array<i64: 128, 128>}, {pipeline_mode = #tpu.pipeline_mode<synchronous>, transform_indices = @transform_4, window_bounds = array<i64: 1, 128>}, {transform_indices = @transform_5, window_bounds = array<i64: 1, 1, 128>}]} {
    %c0 = arith.constant 0 : index
    %c0_0 = arith.constant 0 : index
    %c0_1 = arith.constant 0 : index
    %0 = vector.load %arg1[%c0, %c0_0, %c0_1] : memref<1x196x128xbf16, #tpu.memory_space<vmem>>, vector<1x196x128xbf16>
    %1 = vector.shape_cast %0 : vector<1x196x128xbf16> to vector<196x128xbf16>
    %c0_2 = arith.constant 0 : index
    %c0_3 = arith.constant 0 : index
    %2 = vector.load %arg2[%c0_2, %c0_3] : memref<128x128xbf16, #tpu.memory_space<vmem>>, vector<128x128xbf16>
    %cst = arith.constant dense<0.000000e+00> : vector<196x128xf32>
    %3 = tpu.matmul %1, %2, %cst {dimension_numbers = #tpu.dot_dimension_numbers<[1], [0], [0], [1], [0, 0, 1, 1], [], []>} : vector<196x128xbf16>, vector<128x128xbf16>, vector<196x128xf32> -> vector<196x128xf32>
    %c0_4 = arith.constant 0 : index
    %c0_5 = arith.constant 0 : index
    %4 = vector.load %arg3[%c0_4, %c0_5] : memref<1x128xf32, #tpu.memory_space<vmem>>, vector<1x128xf32>
    %5 = vector.broadcast %4 : vector<1x128xf32> to vector<196x128xf32>
    %6 = arith.addf %3, %5 : vector<196x128xf32>
    %cst_6 = arith.constant 0.000000e+00 : f32
    %7 = vector.broadcast %cst_6 : f32 to vector<196x128xf32>
    %8 = arith.maximumf %6, %7 : vector<196x128xf32>
    %cst_7 = arith.constant 1.000000e+00 : bf16
    %9 = vector.broadcast %cst_7 : bf16 to vector<1x196xbf16>
    %10 = arith.truncf %8 : vector<196x128xf32> to vector<196x128xbf16>
    %cst_8 = arith.constant dense<0.000000e+00> : vector<1x128xf32>
    %11 = tpu.matmul %9, %10, %cst_8 {dimension_numbers = #tpu.dot_dimension_numbers<[1], [0], [0], [1], [0, 0, 1, 1], [], []>} : vector<1x196xbf16>, vector<196x128xbf16>, vector<1x128xf32> -> vector<1x128xf32>
    %12 = arith.truncf %11 : vector<1x128xf32> to vector<1x128xbf16>
    %c0_9 = arith.constant 0 : index
    %c0_10 = arith.constant 0 : index
    %13 = vector.load %arg4[%c0_9, %c0_10] : memref<128x128xbf16, #tpu.memory_space<vmem>>, vector<128x128xbf16>
    %cst_11 = arith.constant dense<0.000000e+00> : vector<1x128xf32>
    %14 = tpu.matmul %12, %13, %cst_11 {dimension_numbers = #tpu.dot_dimension_numbers<[1], [0], [0], [1], [0, 0, 1, 1], [], []>} : vector<1x128xbf16>, vector<128x128xbf16>, vector<1x128xf32> -> vector<1x128xf32>
    %c0_12 = arith.constant 0 : index
    %c0_13 = arith.constant 0 : index
    %15 = vector.load %arg5[%c0_12, %c0_13] : memref<1x128xf32, #tpu.memory_space<vmem>>, vector<1x128xf32>
    %16 = arith.addf %14, %15 : vector<1x128xf32>
    %c0_14 = arith.constant 0 : index
    %c0_15 = arith.constant 0 : index
    %c0_16 = arith.constant 0 : index
    %17 = vector.load %arg6[%c0_14, %c0_15, %c0_16] : memref<1x1x128xf32, #tpu.memory_space<vmem>>, vector<1x1x128xf32>
    %18 = vector.shape_cast %17 : vector<1x1x128xf32> to vector<1x128xf32>
    %19 = vector.shape_cast %16 : vector<1x128xf32> to vector<1x1x128xf32>
    tpu.vector_store %arg6[%c0_14, %c0_15, %c0_16], %19 {strides = array<i32>} : memref<1x1x128xf32, #tpu.memory_space<vmem>>, vector<1x1x128xf32>,
    return
  }
  func.func @transform_0(%arg0: i32) -> (i32, i32, i32) {
    %c0_i32 = arith.constant 0 : i32
    %c0_i32_0 = arith.constant 0 : i32
    %c0_i32_1 = arith.constant 0 : i32
    return %arg0, %c0_i32, %c0_i32_0 : i32, i32, i32
  }
  func.func @transform_1(%arg0: i32) -> (i32, i32) {
    %c0_i32 = arith.constant 0 : i32
    %c0_i32_0 = arith.constant 0 : i32
    %c0_i32_1 = arith.constant 0 : i32
    return %c0_i32, %c0_i32_0 : i32, i32
  }
  func.func @transform_2(%arg0: i32) -> (i32, i32) {
    %c0_i32 = arith.constant 0 : i32
    %c0_i32_0 = arith.constant 0 : i32
    %c0_i32_1 = arith.constant 0 : i32
    return %c0_i32, %c0_i32_0 : i32, i32
  }
  func.func @transform_3(%arg0: i32) -> (i32, i32) {
    %c0_i32 = arith.constant 0 : i32
    %c0_i32_0 = arith.constant 0 : i32
    %c0_i32_1 = arith.constant 0 : i32
    return %c0_i32, %c0_i32_0 : i32, i32
  }
  func.func @transform_4(%arg0: i32) -> (i32, i32) {
    %c0_i32 = arith.constant 0 : i32
    %c0_i32_0 = arith.constant 0 : i32
    %c0_i32_1 = arith.constant 0 : i32
    return %c0_i32, %c0_i32_0 : i32, i32
  }
  func.func @transform_5(%arg0: i32) -> (i32, i32, i32) {
    %c0_i32 = arith.constant 0 : i32
    %c0_i32_0 = arith.constant 0 : i32
    %c0_i32_1 = arith.constant 0 : i32
    return %arg0, %c0_i32, %c0_i32_0 : i32, i32, i32
  }
}

</mosaic_0001>

<llo_original>
// kernel: tpu_custom_call.1
$region0: #{tpu_custom_call.1}
  #allocation0 [shape = 'u32[]', space=smem, size = 0x4, offset = 0x4, fixed_abs, tag = 'smem constant byte address 0x4 - core index']
  #allocation1 [shape = 'u32[144,128]{1,0:T(1,128)}', space=vmem, size = 0x12000, scoped, tag = 'internal scratch']
  %s0 = inlined_call_operand.vmem [shape: bf16[8,196,128], index: 0, kind: input, shape index: {}]
  %s1 = inlined_call_operand.vmem [shape: bf16[128,128], index: 1, kind: input, shape index: {}]
  %s2 = inlined_call_operand.vmem [shape: f32[1,128], index: 2, kind: input, shape index: {}]
  %s3 = inlined_call_operand.vmem [shape: bf16[128,128], index: 3, kind: input, shape index: {}]
  %s4 = inlined_call_operand.vmem [shape: f32[1,128], index: 4, kind: input, shape index: {}]
  %s5 = inlined_call_operand.hbm [shape: f32[8,1,128], index: 5, kind: output, shape index: {}]
  %s6 = sld [smem:[#allocation0]]
  $region53: #{tpu_custom_call.1} parent=0
    _
  %s8 = ssub.s32 1, %s6
  %s9 = scalar_select 0, %s8, %s6
  $region1: #{tpu_custom_call.1} parent=0
    #allocation2 [shape = 'u8[1024]{0}', space=vmem, size = 0x400, scoped, tag = 'output window, operand 0']
    #allocation3 [shape = 's32[2]{0}', space=sflag, size = 0x8, scoped, tag = 'scoped memory for tpu_custom_call.1']
    %10 = vsyncpa [#allocation3], 0
    %s11 = scalar_lea.sflag [#allocation3], 1
    %12 = vsyncpa %s11, 0
    loop: start=0, step=1, limit=10
    $region2: #{tpu_custom_call.1} parent=1 // loop_pre_header
      _
    $region3: #{tpu_custom_call.1} parent=1 // loop_header
      %s14 = sphi 0, %s18
      %p15 = scmp.ge.s32.totalorder %s14, 10
      %s24 = sphi 0, %s26
      %s27 = sphi 0, %s24
      %s28 = sphi 0, %s27
      %s44 = sphi 0, %s28
      %s48 = sphi 0, %s48
      %s50 = sphi 0, %s48
      %s51 = sphi 0, %s50
      %s65 = sphi 0, %s51
      %s69 = sphi 0, %s69
      %s71 = sphi 0, %s69
      %s72 = sphi 0, %s71
      %s86 = sphi 0, %s72
      %s90 = sphi 0, %s90
      %s92 = sphi 0, %s90
      %s93 = sphi 0, %s92
      %s107 = sphi 0, %s93
      %s111 = sphi 0, %s111
      %s113 = sphi 0, %s111
      %s114 = sphi 0, %s113
      %s128 = sphi 0, %s114
      %s134 = sphi 0, %s136
      %s137 = sphi 0, %s134
      %s138 = sphi 0, %s137
      %s154 = sphi 0, %s138
    $region4: #{tpu_custom_call.1} parent=1 // loop_header_branch
      %17 = sbr.rel (%p15) target = $region8
    $region5: #{tpu_custom_call.1} parent=1 // loop_body
      %s19 = ssub.s32 %s14, 1
      %s20 = ssub.s32 %s14, 2
      %s21 = sadd.s32 %s14, 1
      %s22 = ssub.s32 %s14, %s21
      %p23 = scmp.eq.s32.totalorder %s22, 0
      %s25 = sadd.s32 %s24, 1
      %s26 = scalar_select %p23, %s24, %s25
      %p29 = pneg %p23
      %p30 = scmp.eq.s32.totalorder %s14, 7
      %p31 = por %p29, %p30
      %p32 = scmp.ne.s32.totalorder %s24, %s27
      %p33 = scmp.eq.s32.totalorder %s14, 0
      %p34 = por %p32, %p33
      %p35 = scmp.ne.s32.totalorder %s24, %s27
      %p36 = scmp.eq.s32.totalorder %s19, 7
      %p37 = por %p35, %p36
      %p38 = scmp.ne.s32.totalorder %s27, %s28
      %p39 = scmp.eq.s32.totalorder %s19, 0
      %p40 = por %p38, %p39
      %p41 = scmp.ne.s32.totalorder %s27, %s28
      %p42 = scmp.eq.s32.totalorder %s20, 7
      %p43 = por %p41, %p42
      %p45 = scmp.ne.s32.totalorder %s28, %s44
      %p46 = scmp.eq.s32.totalorder %s20, 0
      %p47 = por %p45, %p46
      %s49 = sadd.s32 %s48, 1
      %p52 = scmp.eq.s32.totalorder %s14, 7
      %p53 = scmp.ne.s32.totalorder %s48, %s50
      %p54 = scmp.eq.s32.totalorder %s14, 0
      %p55 = por %p53, %p54
      %p56 = scmp.ne.s32.totalorder %s48, %s50
      %p57 = scmp.eq.s32.totalorder %s19, 7
      %p58 = por %p56, %p57
      %p59 = scmp.ne.s32.totalorder %s50, %s51
      %p60 = scmp.eq.s32.totalorder %s19, 0
      %p61 = por %p59, %p60
      %p62 = scmp.ne.s32.totalorder %s50, %s51
      %p63 = scmp.eq.s32.totalorder %s20, 7
      %p64 = por %p62, %p63
      %p66 = scmp.ne.s32.totalorder %s51, %s65
      %p67 = scmp.eq.s32.totalorder %s20, 0
      %p68 = por %p66, %p67
      %s70 = sadd.s32 %s69, 1
      %p73 = scmp.eq.s32.totalorder %s14, 7
      %p74 = scmp.ne.s32.totalorder %s69, %s71
      %p75 = scmp.eq.s32.totalorder %s14, 0
      %p76 = por %p74, %p75
      %p77 = scmp.ne.s32.totalorder %s69, %s71
      %p78 = scmp.eq.s32.totalorder %s19, 7
      %p79 = por %p77, %p78
      %p80 = scmp.ne.s32.totalorder %s71, %s72
      %p81 = scmp.eq.s32.totalorder %s19, 0
      %p82 = por %p80, %p81
      %p83 = scmp.ne.s32.totalorder %s71, %s72
      %p84 = scmp.eq.s32.totalorder %s20, 7
      %p85 = por %p83, %p84
      %p87 = scmp.ne.s32.totalorder %s72, %s86
      %p88 = scmp.eq.s32.totalorder %s20, 0
      %p89 = por %p87, %p88
      %s91 = sadd.s32 %s90, 1
      %p94 = scmp.eq.s32.totalorder %s14, 7
      %p95 = scmp.ne.s32.totalorder %s90, %s92
      %p96 = scmp.eq.s32.totalorder %s14, 0
      %p97 = por %p95, %p96
      %p98 = scmp.ne.s32.totalorder %s90, %s92
      %p99 = scmp.eq.s32.totalorder %s19, 7
      %p100 = por %p98, %p99
      %p101 = scmp.ne.s32.totalorder %s92, %s93
      %p102 = scmp.eq.s32.totalorder %s19, 0
      %p103 = por %p101, %p102
      %p104 = scmp.ne.s32.totalorder %s92, %s93
      %p105 = scmp.eq.s32.totalorder %s20, 7
      %p106 = por %p104, %p105
      %p108 = scmp.ne.s32.totalorder %s93, %s107
      %p109 = scmp.eq.s32.totalorder %s20, 0
      %p110 = por %p108, %p109
      %s112 = sadd.s32 %s111, 1
      %p115 = scmp.eq.s32.totalorder %s14, 7
      %p116 = scmp.ne.s32.totalorder %s111, %s113
      %p117 = scmp.eq.s32.totalorder %s14, 0
      %p118 = por %p116, %p117
      %p119 = scmp.ne.s32.totalorder %s111, %s113
      %p120 = scmp.eq.s32.totalorder %s19, 7
      %p121 = por %p119, %p120
      %p122 = scmp.ne.s32.totalorder %s113, %s114
      %p123 = scmp.eq.s32.totalorder %s19, 0
      %p124 = por %p122, %p123
      %p125 = scmp.ne.s32.totalorder %s113, %s114
      %p126 = scmp.eq.s32.totalorder %s20, 7
      %p127 = por %p125, %p126
      %p129 = scmp.ne.s32.totalorder %s114, %s128
      %p130 = scmp.eq.s32.totalorder %s20, 0
      %p131 = por %p129, %p130
      %s132 = ssub.s32 %s14, %s21
      %p133 = scmp.eq.s32.totalorder %s132, 0
      %s135 = sadd.s32 %s134, 1
      %s136 = scalar_select %p133, %s134, %s135
      %p139 = pneg %p133
      %p140 = scmp.eq.s32.totalorder %s14, 7
      %p141 = por %p139, %p140
      %p142 = scmp.ne.s32.totalorder %s134, %s137
      %p143 = scmp.eq.s32.totalorder %s14, 0
      %p144 = por %p142, %p143
      %p145 = scmp.ne.s32.totalorder %s134, %s137
      %p146 = scmp.eq.s32.totalorder %s19, 7
      %p147 = por %p145, %p146
      %p148 = scmp.ne.s32.totalorder %s137, %s138
      %p149 = scmp.eq.s32.totalorder %s19, 0
      %p150 = por %p148, %p149
      %p151 = scmp.ne.s32.totalorder %s137, %s138
      %p152 = scmp.eq.s32.totalorder %s20, 7
      %p153 = por %p151, %p152
      %p155 = scmp.ne.s32.totalorder %s138, %s154
      %p156 = scmp.eq.s32.totalorder %s20, 0
      %p157 = por %p155, %p156
      %p158 = scmp.le.s32.totalorder 1, %s14
      %p159 = scmp.lt.s32.totalorder %s14, 9
      %p160 = pnand %p158, %p159
      %p161 = pneg %p160
      // Predicated region
      $region9: #{tpu_custom_call.1} parent=5 // pred_check
        _
      $region10: #{tpu_custom_call.1} parent=5 // pred_check_branch
        %163 = sbr.rel (%p160) target = $region12
      $region11: #{tpu_custom_call.1} parent=5 // pred_region
        %s164 = ssub.s32 %s14, 1
        // Predicated region
        $region13: #{tpu_custom_call.1} parent=11 // pred_check
          %p165 = pneg %p61
        $region14: #{tpu_custom_call.1} parent=11 // pred_check_branch
          %167 = sbr.rel (%p165) target = $region16
        $region15: #{tpu_custom_call.1} parent=11 // pred_region
          _
        $region16: #{tpu_custom_call.1} parent=11 // pred_fallthru
          _
        // Predicated region
        $region17: #{tpu_custom_call.1} parent=11 // pred_check
          %p168 = pneg %p82
        $region18: #{tpu_custom_call.1} parent=11 // pred_check_branch
          %170 = sbr.rel (%p168) target = $region20
        $region19: #{tpu_custom_call.1} parent=11 // pred_region
          _
        $region20: #{tpu_custom_call.1} parent=11 // pred_fallthru
          _
        // Predicated region
        $region21: #{tpu_custom_call.1} parent=11 // pred_check
          %p171 = pneg %p103
        $region22: #{tpu_custom_call.1} parent=11 // pred_check_branch
          %173 = sbr.rel (%p171) target = $region24
        $region23: #{tpu_custom_call.1} parent=11 // pred_region
          _
        $region24: #{tpu_custom_call.1} parent=11 // pred_fallthru
          _
        // Predicated region
        $region25: #{tpu_custom_call.1} parent=11 // pred_check
          %p174 = pneg %p124
        $region26: #{tpu_custom_call.1} parent=11 // pred_check_branch
          %176 = sbr.rel (%p174) target = $region28
        $region27: #{tpu_custom_call.1} parent=11 // pred_region
          _
        $region28: #{tpu_custom_call.1} parent=11 // pred_fallthru
          _
      $region12: #{tpu_custom_call.1} parent=5 // pred_fallthru
        _
      %p177 = scmp.lt.s32.totalorder %s14, 8
      // Predicated region
      $region29: #{tpu_custom_call.1} parent=5 // pred_check
        %p178 = pneg %p177
      $region30: #{tpu_custom_call.1} parent=5 // pred_check_branch
        %180 = sbr.rel (%p178) target = $region32
      $region31: #{tpu_custom_call.1} parent=5 // pred_region
        // Predicated region
        $region33: #{tpu_custom_call.1} parent=31 // pred_check
          %p181 = pneg %p34
        $region34: #{tpu_custom_call.1} parent=31 // pred_check_branch
          %183 = sbr.rel (%p181) target = $region36
        $region35: #{tpu_custom_call.1} parent=31 // pred_region
          %p184 = scmp.lt.s32.totalorder %s14, 7
          %s185 = scalar_select %p184, %s14, 7
          %s186 = smul.addr %s185, 25
          %s187 = smul.addr %s186, 4
          %s188 = scalar_lea.vmem %s0, %s187
        $region36: #{tpu_custom_call.1} parent=31 // pred_fallthru
          _
      $region32: #{tpu_custom_call.1} parent=5 // pred_fallthru
        _
      %p189 = scmp.le.s32.totalorder 1, %s14
      %p190 = scmp.lt.s32.totalorder %s14, 9
      %p191 = pnand %p189, %p190
      %p192 = pneg %p191
      // Predicated region
      $region37: #{tpu_custom_call.1} parent=5 // pred_check
        _
      $region38: #{tpu_custom_call.1} parent=5 // pred_check_branch
        %194 = sbr.rel (%p191) target = $region40
      $region39: #{tpu_custom_call.1} parent=5 // pred_region
        %s195 = ssub.s32 %s14, 1
        %p196 = scmp.lt.s32.totalorder %s19, 7
        %s197 = scalar_select %p196, %s19, 7
        %s198 = smul.addr %s197, 25
        %s199 = smul.addr %s198, 4
        %s200 = scalar_lea.vmem %s0, %s199
        %p201 = pneg %p40
        %p202 = pneg %p37
        %p203 = pneg %p61
        %p204 = pneg %p58
        %p205 = pneg %p82
        %p206 = pneg %p79
        %p207 = pneg %p103
        %p208 = pneg %p100
        %p209 = pneg %p124
        %p210 = pneg %p121
        %p211 = pneg %p150
        %p212 = pneg %p147
        %s213 = sand.u32 %s137, 1
        %s214 = scalar_lea.sflag [#allocation3], %s213
        %s215 = sand.u32 %s137, 1
        %s216 = scalar_lea.vmem [#allocation2], %s215
        %p217 = scmp.lt.s32.totalorder %s19, 7
        %s218 = scalar_select %p217, %s19, 7
        %s219 = smul.addr %s218, 25
        %s220 = smul.addr %s219, 4
        %s221 = scalar_lea.vmem %s0, %s220
        %v224 = vld [vmem:[%s221] sm:$0xf]
        %v225 = vld [vmem:[%s221 + $0x4] sm:$0xf]
        %v226 = vld [vmem:[%s221 + $0x8] sm:$0xf]
        %v227 = vld [vmem:[%s221 + $0xc] sm:$0xf]
        %v228 = vld [vmem:[%s221 + $0x10] sm:$0xf]
        %v229 = vld [vmem:[%s221 + $0x14] sm:$0xf]
        %v230 = vld [vmem:[%s221 + $0x18] sm:$0xf]
        %v231 = vld [vmem:[%s221 + $0x1c] sm:$0xf]
        %v232 = vld [vmem:[%s221 + $0x20] sm:$0xf]
        %v233 = vld [vmem:[%s221 + $0x24] sm:$0xf]
        %v234 = vld [vmem:[%s221 + $0x28] sm:$0xf]
        %v235 = vld [vmem:[%s221 + $0x2c] sm:$0xf]
        %v236 = vld [vmem:[%s221 + $0x30] sm:$0xf]
        %v237 = vld [vmem:[%s221 + $0x34] sm:$0xf]
        %v238 = vld [vmem:[%s221 + $0x38] sm:$0xf]
        %v239 = vld [vmem:[%s221 + $0x3c] sm:$0xf]
        %v240 = vld [vmem:[%s221 + $0x40] sm:$0xf]
        %v241 = vld [vmem:[%s221 + $0x44] sm:$0xf]
        %v242 = vld [vmem:[%s221 + $0x48] sm:$0xf]
        %v243 = vld [vmem:[%s221 + $0x4c] sm:$0xf]
        %v244 = vld [vmem:[%s221 + $0x50] sm:$0xf]
        %v245 = vld [vmem:[%s221 + $0x54] sm:$0xf]
        %v246 = vld [vmem:[%s221 + $0x58] sm:$0xf]
        %v247 = vld [vmem:[%s221 + $0x5c] sm:$0xf]
        %v248 = vld [vmem:[%s221 + $0x60] sm:$0x3]
        %v249 = vld [vmem:[%s1] sm:$0xf]
        %v250 = vld [vmem:[%s1 + $0x4] sm:$0xf]
        %v251 = vld [vmem:[%s1 + $0x8] sm:$0xf]
        %v252 = vld [vmem:[%s1 + $0xc] sm:$0xf]
        %v253 = vld [vmem:[%s1 + $0x10] sm:$0xf]
        %v254 = vld [vmem:[%s1 + $0x14] sm:$0xf]
        %v255 = vld [vmem:[%s1 + $0x18] sm:$0xf]
        %v256 = vld [vmem:[%s1 + $0x1c] sm:$0xf]
        %v257 = vld [vmem:[%s1 + $0x20] sm:$0xf]
        %v258 = vld [vmem:[%s1 + $0x24] sm:$0xf]
        %v259 = vld [vmem:[%s1 + $0x28] sm:$0xf]
        %v260 = vld [vmem:[%s1 + $0x2c] sm:$0xf]
        %v261 = vld [vmem:[%s1 + $0x30] sm:$0xf]
        %v262 = vld [vmem:[%s1 + $0x34] sm:$0xf]
        %v263 = vld [vmem:[%s1 + $0x38] sm:$0xf]
        %v264 = vld [vmem:[%s1 + $0x3c] sm:$0xf]
        %v265 = vld [vmem:[%s2] sm:$0x1]
        %v267 = vlaneseq
        %v268 = vshrl.u32 %v267, 7
        %v269 = vsub.s32 0, %v268
        %v270 = vrot.slane %v265, %v269
        %v297 = vunpack.c.l.b16 %v224
        %v298 = vunpack.c.l.b16 %v225
        %v299 = vunpack.c.l.b16 %v226
        %v300 = vunpack.c.l.b16 %v227
        %v301 = vunpack.c.l.b16 %v228
        %v302 = vunpack.c.l.b16 %v229
        %v303 = vunpack.c.l.b16 %v230
        %v304 = vunpack.c.l.b16 %v231
        %v305 = vunpack.c.l.b16 %v232
        %v306 = vunpack.c.l.b16 %v233
        %v307 = vunpack.c.l.b16 %v234
        %v308 = vunpack.c.l.b16 %v235
        %v309 = vunpack.c.l.b16 %v236
        %v310 = vunpack.c.l.b16 %v237
        %v311 = vunpack.c.l.b16 %v238
        %v312 = vunpack.c.l.b16 %v239
        %v313 = vunpack.c.l.b16 %v240
        %v314 = vunpack.c.l.b16 %v241
        %v315 = vunpack.c.l.b16 %v242
        %v316 = vunpack.c.l.b16 %v243
        %v317 = vunpack.c.l.b16 %v244
        %v318 = vunpack.c.l.b16 %v245
        %v319 = vunpack.c.l.b16 %v246
        %v320 = vunpack.c.l.b16 %v247
        %v321 = vunpack.c.l.b16 %v248
        %v322 = vpack.c.b16 %v298, %v297
        %v323 = vpack.c.b16 %v300, %v299
        %v324 = vpack.c.b16 %v302, %v301
        %v325 = vpack.c.b16 %v304, %v303
        %v326 = vpack.c.b16 %v306, %v305
        %v327 = vpack.c.b16 %v308, %v307
        %v328 = vpack.c.b16 %v310, %v309
        %v329 = vpack.c.b16 %v312, %v311
        %v330 = vpack.c.b16 %v314, %v313
        %v331 = vpack.c.b16 %v316, %v315
        %v332 = vpack.c.b16 %v318, %v317
        %v333 = vpack.c.b16 %v320, %v319
        %v334 = vpack.c.b16 %v321, %v321
        %v364 = vunpack.c.l.b16 %v249
        %v365 = vunpack.c.l.b16 %v250
        %v366 = vunpack.c.l.b16 %v251
        %v367 = vunpack.c.l.b16 %v252
        %v368 = vunpack.c.l.b16 %v253
        %v369 = vunpack.c.l.b16 %v254
        %v370 = vunpack.c.l.b16 %v255
        %v371 = vunpack.c.l.b16 %v256
        %v372 = vunpack.c.l.b16 %v257
        %v373 = vunpack.c.l.b16 %v258
        %v374 = vunpack.c.l.b16 %v259
        %v375 = vunpack.c.l.b16 %v260
        %v376 = vunpack.c.l.b16 %v261
        %v377 = vunpack.c.l.b16 %v262
        %v378 = vunpack.c.l.b16 %v263
        %v379 = vunpack.c.l.b16 %v264
        %v380 = vpack.c.b16 %v365, %v364
        %v381 = vpack.c.b16 %v367, %v366
        %v382 = vpack.c.b16 %v369, %v368
        %v383 = vpack.c.b16 %v371, %v370
        %v384 = vpack.c.b16 %v373, %v372
        %v385 = vpack.c.b16 %v375, %v374
        %v386 = vpack.c.b16 %v377, %v376
        %v387 = vpack.c.b16 %v379, %v378
        %396 = vmatprep.subr.bf16.mxu0 0
        %397 = vmatpush1.bf16.msra.mxu0 %v380
        %398 = vmatprep.subr.bf16.mxu0 0
        %399 = vmatpush1.bf16.msra.mxu0 %v381
        %400 = vmatprep.subr.bf16.mxu0 0
        %401 = vmatpush1.bf16.msra.mxu0 %v382
        %402 = vmatprep.subr.bf16.mxu0 0
        %403 = vmatpush1.bf16.msra.mxu0 %v383
        %404 = vmatprep.subr.bf16.mxu0 0
        %405 = vmatpush1.bf16.msra.mxu0 %v384
        %406 = vmatprep.subr.bf16.mxu0 0
        %407 = vmatpush1.bf16.msra.mxu0 %v385
        %408 = vmatprep.subr.bf16.mxu0 0
        %409 = vmatpush1.bf16.msra.mxu0 %v386
        %410 = vmatprep.subr.bf16.mxu0 0
        %411 = vmatpush1.bf16.msra.mxu0 %v387
        %412 = vmatprep.subr.bf16.mxu0 0
        %413 = vmatpush1.bf16.msra.mxu0 0
        %414 = vmatprep.subr.bf16.mxu0 0
        %415 = vmatpush1.bf16.msra.mxu0 0
        %416 = vmatprep.subr.bf16.mxu0 0
        %417 = vmatpush1.bf16.msra.mxu0 0
        %418 = vmatprep.subr.bf16.mxu0 0
        %419 = vmatpush1.bf16.msra.mxu0 0
        %420 = vmatprep.subr.bf16.mxu0 0
        %421 = vmatpush1.bf16.msra.mxu0 0
        %422 = vmatprep.subr.bf16.mxu0 0
        %423 = vmatpush1.bf16.msra.mxu0 0
        %424 = vmatprep.subr.bf16.mxu0 0
        %425 = vmatpush1.bf16.msra.mxu0 0
        %426 = vmatprep.subr.bf16.mxu0 0
        %427 = vmatpush1.bf16.msra.mxu0 0
        %428 = vmatprep.mubr.bf16.mxu0 0
        %429 = vmatmul.mubr.bf16.gmra.mrb[0].mxu0 %v322
        %v430 = vpop.f32.mrb[0].mxu0
        %v431 = vadd.f32 %v270, %v430
        %v432 = vpop.f32.mrb[0].mxu0
        %v433 = vpop.f32.mrb[0].mxu0
        %v434 = vadd.f32 %v270, %v433
        %v435 = vpop.f32.mrb[0].mxu0
        %436 = vmatprep.mubr.bf16.mxu0 0
        %437 = vmatmul.mubr.bf16.gmra.mrb[0].mxu0 %v323
        %v438 = vpop.f32.mrb[0].mxu0
        %v439 = vadd.f32 %v270, %v438
        %v440 = vpop.f32.mrb[0].mxu0
        %v441 = vpop.f32.mrb[0].mxu0
        %v442 = vadd.f32 %v270, %v441
        %v443 = vpop.f32.mrb[0].mxu0
        %444 = vmatprep.mubr.bf16.mxu0 0
        %445 = vmatmul.mubr.bf16.gmra.mrb[0].mxu0 %v324
        %v446 = vpop.f32.mrb[0].mxu0
        %v447 = vadd.f32 %v270, %v446
        %v448 = vpop.f32.mrb[0].mxu0
        %v449 = vpop.f32.mrb[0].mxu0
        %v450 = vadd.f32 %v270, %v449
        %v451 = vpop.f32.mrb[0].mxu0
        %452 = vmatprep.mubr.bf16.mxu0 0
        %453 = vmatmul.mubr.bf16.gmra.mrb[0].mxu0 %v325
        %v454 = vpop.f32.mrb[0].mxu0
        %v455 = vadd.f32 %v270, %v454
        %v456 = vpop.f32.mrb[0].mxu0
        %v457 = vpop.f32.mrb[0].mxu0
        %v458 = vadd.f32 %v270, %v457
        %v459 = vpop.f32.mrb[0].mxu0
        %460 = vmatprep.mubr.bf16.mxu0 0
        %461 = vmatmul.mubr.bf16.gmra.mrb[0].mxu0 %v326
        %v462 = vpop.f32.mrb[0].mxu0
        %v463 = vadd.f32 %v270, %v462
        %v464 = vpop.f32.mrb[0].mxu0
        %v465 = vpop.f32.mrb[0].mxu0
        %v466 = vadd.f32 %v270, %v465
        %v467 = vpop.f32.mrb[0].mxu0
        %468 = vmatprep.mubr.bf16.mxu0 0
        %469 = vmatmul.mubr.bf16.gmra.mrb[0].mxu0 %v327
        %v470 = vpop.f32.mrb[0].mxu0
        %v471 = vadd.f32 %v270, %v470
        %v472 = vpop.f32.mrb[0].mxu0
        %v473 = vpop.f32.mrb[0].mxu0
        %v474 = vadd.f32 %v270, %v473
        %v475 = vpop.f32.mrb[0].mxu0
        %476 = vmatprep.mubr.bf16.mxu0 0
        %477 = vmatmul.mubr.bf16.gmra.mrb[0].mxu0 %v328
        %v478 = vpop.f32.mrb[0].mxu0
        %v479 = vadd.f32 %v270, %v478
        %v480 = vpop.f32.mrb[0].mxu0
        %v481 = vpop.f32.mrb[0].mxu0
        %v482 = vadd.f32 %v270, %v481
        %v483 = vpop.f32.mrb[0].mxu0
        %484 = vmatprep.mubr.bf16.mxu0 0
        %485 = vmatmul.mubr.bf16.gmra.mrb[0].mxu0 %v329
        %v486 = vpop.f32.mrb[0].mxu0
        %v487 = vadd.f32 %v270, %v486
        %v488 = vpop.f32.mrb[0].mxu0
        %v489 = vpop.f32.mrb[0].mxu0
        %v490 = vadd.f32 %v270, %v489
        %v491 = vpop.f32.mrb[0].mxu0
        %492 = vmatprep.mubr.bf16.mxu0 0
        %493 = vmatmul.mubr.bf16.gmra.mrb[0].mxu0 %v330
        %v494 = vpop.f32.mrb[0].mxu0
        %v495 = vadd.f32 %v270, %v494
        %v496 = vpop.f32.mrb[0].mxu0
        %v497 = vpop.f32.mrb[0].mxu0
        %v498 = vadd.f32 %v270, %v497
        %v499 = vpop.f32.mrb[0].mxu0
        %500 = vmatprep.mubr.bf16.mxu0 0
        %501 = vmatmul.mubr.bf16.gmra.mrb[0].mxu0 %v331
        %v502 = vpop.f32.mrb[0].mxu0
        %v503 = vadd.f32 %v270, %v502
        %v504 = vpop.f32.mrb[0].mxu0
        %v505 = vpop.f32.mrb[0].mxu0
        %v506 = vadd.f32 %v270, %v505
        %v507 = vpop.f32.mrb[0].mxu0
        %508 = vmatprep.mubr.bf16.mxu0 0
        %509 = vmatmul.mubr.bf16.gmra.mrb[0].mxu0 %v332
        %v510 = vpop.f32.mrb[0].mxu0
        %v511 = vadd.f32 %v270, %v510
        %v512 = vpop.f32.mrb[0].mxu0
        %v513 = vpop.f32.mrb[0].mxu0
        %v514 = vadd.f32 %v270, %v513
        %v515 = vpop.f32.mrb[0].mxu0
        %516 = vmatprep.mubr.bf16.mxu0 0
        %517 = vmatmul.mubr.bf16.gmra.mrb[0].mxu0 %v333
        %v518 = vpop.f32.mrb[0].mxu0
        %v519 = vadd.f32 %v270, %v518
        %v520 = vpop.f32.mrb[0].mxu0
        %v521 = vpop.f32.mrb[0].mxu0
        %v522 = vadd.f32 %v270, %v521
        %v523 = vpop.f32.mrb[0].mxu0
        %524 = vmatprep.mubr.bf16.mxu0 0
        %525 = vmatmul.mubr.bf16.gmra.mrb[0].mxu0 %v334
        %v526 = vpop.f32.mrb[0].mxu0
        %v527 = vadd.f32 %v270, %v526
        %v528 = vpop.f32.mrb[0].mxu0
        %v529 = vpop.f32.mrb[0].mxu0
        %v530 = vpop.f32.mrb[0].mxu0
        %531 = vdwg.mxu0
        %v532 = vmax.f32 %v431, 0.0
        %v533 = vmax.f32 %v434, 0.0
        %v534 = vmax.f32 %v439, 0.0
        %v535 = vmax.f32 %v442, 0.0
        %v536 = vmax.f32 %v447, 0.0
        %v537 = vmax.f32 %v450, 0.0
        %v538 = vmax.f32 %v455, 0.0
        %v539 = vmax.f32 %v458, 0.0
        %v540 = vmax.f32 %v463, 0.0
        %v541 = vmax.f32 %v466, 0.0
        %v542 = vmax.f32 %v471, 0.0
        %v543 = vmax.f32 %v474, 0.0
        %v544 = vmax.f32 %v479, 0.0
        %v545 = vmax.f32 %v482, 0.0
        %v546 = vmax.f32 %v487, 0.0
        %v547 = vmax.f32 %v490, 0.0
        %v548 = vmax.f32 %v495, 0.0
        %v549 = vmax.f32 %v498, 0.0
        %v550 = vmax.f32 %v503, 0.0
        %v551 = vmax.f32 %v506, 0.0
        %v552 = vmax.f32 %v511, 0.0
        %v553 = vmax.f32 %v514, 0.0
        %v554 = vmax.f32 %v519, 0.0
        %v555 = vmax.f32 %v522, 0.0
        %v556 = vmax.f32 %v527, 0.0
        %v557 = vpack.c.bf16 %v533, %v532
        %v558 = vpack.c.bf16 %v535, %v534
        %v559 = vpack.c.bf16 %v537, %v536
        %v560 = vpack.c.bf16 %v539, %v538
        %v561 = vpack.c.bf16 %v541, %v540
        %v562 = vpack.c.bf16 %v543, %v542
        %v563 = vpack.c.bf16 %v545, %v544
        %v564 = vpack.c.bf16 %v547, %v546
        %v565 = vpack.c.bf16 %v549, %v548
        %v566 = vpack.c.bf16 %v551, %v550
        %v567 = vpack.c.bf16 %v553, %v552
        %v568 = vpack.c.bf16 %v555, %v554
        %v569 = vpack.c.bf16 %v556, %v556
        %vm570 = vcmask 556032
        %v572 = vsel %vm570, 1065369472, 0
        %vm574 = vcmask 1041408
        %v576 = vsel %vm574, %v569, 0
        %578 = vmatprep.subr.bf16.mxu0 0
        %579 = vmatpush1.bf16.msra.mxu0 %v557
        %580 = vmatprep.subr.bf16.mxu0 0
        %581 = vmatpush1.bf16.msra.mxu0 %v558
        %582 = vmatprep.subr.bf16.mxu0 0
        %583 = vmatpush1.bf16.msra.mxu0 %v559
        %584 = vmatprep.subr.bf16.mxu0 0
        %585 = vmatpush1.bf16.msra.mxu0 %v560
        %586 = vmatprep.subr.bf16.mxu0 0
        %587 = vmatpush1.bf16.msra.mxu0 %v561
        %588 = vmatprep.subr.bf16.mxu0 0
        %589 = vmatpush1.bf16.msra.mxu0 %v562
        %590 = vmatprep.subr.bf16.mxu0 0
        %591 = vmatpush1.bf16.msra.mxu0 %v563
        %592 = vmatprep.subr.bf16.mxu0 0
        %593 = vmatpush1.bf16.msra.mxu0 %v564
        %594 = vmatprep.subr.bf16.mxu0 0
        %595 = vmatpush1.bf16.msra.mxu0 %v565
        %596 = vmatprep.subr.bf16.mxu0 0
        %597 = vmatpush1.bf16.msra.mxu0 %v566
        %598 = vmatprep.subr.bf16.mxu0 0
        %599 = vmatpush1.bf16.msra.mxu0 %v567
        %600 = vmatprep.subr.bf16.mxu0 0
        %601 = vmatpush1.bf16.msra.mxu0 %v568
        %602 = vmatprep.subr.bf16.mxu0 0
        %603 = vmatpush1.bf16.msra.mxu0 %v576
        %604 = vmatprep.subr.bf16.mxu0 0
        %605 = vmatpush1.bf16.msra.mxu0 0
        %606 = vmatprep.subr.bf16.mxu0 0
        %607 = vmatpush1.bf16.msra.mxu0 0
        %608 = vmatprep.subr.bf16.mxu0 0
        %609 = vmatpush1.bf16.msra.mxu0 0
        %610 = vmatprep.mubr.bf16.mxu0 %v572
        %611 = vmatmul.mubr.bf16.gmra.mrb[0].mxu0 1065369472
        %v612 = vpop.f32.mrb[0].mxu0
        %v613 = vadd.f32 0.0, %v612
        %v614 = vpop.f32.mrb[0].mxu0
        %v615 = vpop.f32.mrb[0].mxu0
        %v616 = vpop.f32.mrb[0].mxu0
        %617 = vdwg.mxu0
        %v618 = vpack.c.bf16 %v613, %v613
        %v619 = vld [vmem:[%s3] sm:$0xf]
        %v620 = vld [vmem:[%s3 + $0x4] sm:$0xf]
        %v621 = vld [vmem:[%s3 + $0x8] sm:$0xf]
        %v622 = vld [vmem:[%s3 + $0xc] sm:$0xf]
        %v623 = vld [vmem:[%s3 + $0x10] sm:$0xf]
        %v624 = vld [vmem:[%s3 + $0x14] sm:$0xf]
        %v625 = vld [vmem:[%s3 + $0x18] sm:$0xf]
        %v626 = vld [vmem:[%s3 + $0x1c] sm:$0xf]
        %v627 = vld [vmem:[%s3 + $0x20] sm:$0xf]
        %v628 = vld [vmem:[%s3 + $0x24] sm:$0xf]
        %v629 = vld [vmem:[%s3 + $0x28] sm:$0xf]
        %v630 = vld [vmem:[%s3 + $0x2c] sm:$0xf]
        %v631 = vld [vmem:[%s3 + $0x30] sm:$0xf]
        %v632 = vld [vmem:[%s3 + $0x34] sm:$0xf]
        %v633 = vld [vmem:[%s3 + $0x38] sm:$0xf]
        %v634 = vld [vmem:[%s3 + $0x3c] sm:$0xf]
        %v635 = vld [vmem:[%s4] sm:$0x1]
        %v652 = vunpack.c.l.b16 %v619
        %v653 = vunpack.c.l.b16 %v620
        %v654 = vunpack.c.l.b16 %v621
        %v655 = vunpack.c.l.b16 %v622
        %v656 = vunpack.c.l.b16 %v623
        %v657 = vunpack.c.l.b16 %v624
        %v658 = vunpack.c.l.b16 %v625
        %v659 = vunpack.c.l.b16 %v626
        %v660 = vunpack.c.l.b16 %v627
        %v661 = vunpack.c.l.b16 %v628
        %v662 = vunpack.c.l.b16 %v629
        %v663 = vunpack.c.l.b16 %v630
        %v664 = vunpack.c.l.b16 %v631
        %v665 = vunpack.c.l.b16 %v632
        %v666 = vunpack.c.l.b16 %v633
        %v667 = vunpack.c.l.b16 %v634
        %v668 = vpack.c.b16 %v653, %v652
        %v669 = vpack.c.b16 %v655, %v654
        %v670 = vpack.c.b16 %v657, %v656
        %v671 = vpack.c.b16 %v659, %v658
        %v672 = vpack.c.b16 %v661, %v660
        %v673 = vpack.c.b16 %v663, %v662
        %v674 = vpack.c.b16 %v665, %v664
        %v675 = vpack.c.b16 %v667, %v666
        %684 = vmatprep.subr.bf16.mxu0 0
        %685 = vmatpush1.bf16.msra.mxu0 %v668
        %686 = vmatprep.subr.bf16.mxu0 0
        %687 = vmatpush1.bf16.msra.mxu0 %v669
        %688 = vmatprep.subr.bf16.mxu0 0
        %689 = vmatpush1.bf16.msra.mxu0 %v670
        %690 = vmatprep.subr.bf16.mxu0 0
        %691 = vmatpush1.bf16.msra.mxu0 %v671
        %692 = vmatprep.subr.bf16.mxu0 0
        %693 = vmatpush1.bf16.msra.mxu0 %v672
        %694 = vmatprep.subr.bf16.mxu0 0
        %695 = vmatpush1.bf16.msra.mxu0 %v673
        %696 = vmatprep.subr.bf16.mxu0 0
        %697 = vmatpush1.bf16.msra.mxu0 %v674
        %698 = vmatprep.subr.bf16.mxu0 0
        %699 = vmatpush1.bf16.msra.mxu0 %v675
        %700 = vmatprep.subr.bf16.mxu0 0
        %701 = vmatpush1.bf16.msra.mxu0 0
        %702 = vmatprep.subr.bf16.mxu0 0
        %703 = vmatpush1.bf16.msra.mxu0 0
        %704 = vmatprep.subr.bf16.mxu0 0
        %705 = vmatpush1.bf16.msra.mxu0 0
        %706 = vmatprep.subr.bf16.mxu0 0
        %707 = vmatpush1.bf16.msra.mxu0 0
        %708 = vmatprep.subr.bf16.mxu0 0
        %709 = vmatpush1.bf16.msra.mxu0 0
        %710 = vmatprep.subr.bf16.mxu0 0
        %711 = vmatpush1.bf16.msra.mxu0 0
        %712 = vmatprep.subr.bf16.mxu0 0
        %713 = vmatpush1.bf16.msra.mxu0 0
        %714 = vmatprep.subr.bf16.mxu0 0
        %715 = vmatpush1.bf16.msra.mxu0 0
        %716 = vmatprep.mubr.bf16.mxu0 0
        %717 = vmatmul.mubr.bf16.gmra.mrb[0].mxu0 %v618
        %v718 = vpop.f32.mrb[0].mxu0
        %v719 = vadd.f32 %v635, %v718
        %v720 = vpop.f32.mrb[0].mxu0
        %v721 = vpop.f32.mrb[0].mxu0
        %v722 = vpop.f32.mrb[0].mxu0
        %723 = vdwg.mxu0
        %724 = vst [vmem:[%s216] sm:$0x1] %v719
        %s725 = sand.u32 %s137, 1
        %s726 = scalar_lea.sflag [#allocation3], %s725
        %s727 = sand.u32 %s137, 1
        %s728 = scalar_lea.vmem [#allocation2], %s727
        // Predicated region
        $region41: #{tpu_custom_call.1} parent=39 // pred_check
          %p729 = pneg %p147
        $region42: #{tpu_custom_call.1} parent=39 // pred_check_branch
          %731 = sbr.rel (%p729) target = $region44
        $region43: #{tpu_custom_call.1} parent=39 // pred_region
          %s733 = ssub.s32 16, 16
          %734 = vsyncadd %s726, %s733
          %s735 = smul.addr %s19, 16
          %s736 = scalar_lea.hbm %s5, %s735
          %s738 = sshll.u32 %s728, 4
          %s739 = int_to_ptr.vmem [resolvable:$true] %s738
          %741 = dma.vmem_to_hbm [thread:$0]  %s739, 16, %s736, %s726
        $region44: #{tpu_custom_call.1} parent=39 // pred_fallthru
          _
      $region40: #{tpu_custom_call.1} parent=5 // pred_fallthru
        _
      %p742 = scmp.le.s32.totalorder 2, %s14
      // Predicated region
      $region45: #{tpu_custom_call.1} parent=5 // pred_check
        %p743 = pneg %p742
      $region46: #{tpu_custom_call.1} parent=5 // pred_check_branch
        %745 = sbr.rel (%p743) target = $region48
      $region47: #{tpu_custom_call.1} parent=5 // pred_region
        %s746 = ssub.s32 %s14, 2
        // Predicated region
        $region49: #{tpu_custom_call.1} parent=47 // pred_check
          %p747 = pneg %p153
        $region50: #{tpu_custom_call.1} parent=47 // pred_check_branch
          %749 = sbr.rel (%p747) target = $region52
        $region51: #{tpu_custom_call.1} parent=47 // pred_region
          %s750 = sand.u32 %s138, 1
          %s751 = scalar_lea.sflag [#allocation3], %s750
          %s752 = sand.u32 %s138, 1
          %s753 = scalar_lea.vmem [#allocation2], %s752
          %754 = dma.done %s751, 16
        $region52: #{tpu_custom_call.1} parent=47 // pred_fallthru
          _
      $region48: #{tpu_custom_call.1} parent=5 // pred_fallthru
        _
    $region6: #{tpu_custom_call.1} parent=1 // loop_footer
      %s18 = sadd.s32 1, %s14
    $region7: #{tpu_custom_call.1} parent=1 // loop_footer_branch
      %13 = sbr.rel target = $region3
    $region8: #{tpu_custom_call.1} parent=1 // loop_exit
      _
    %755 = vsyncpa [#allocation3], 1
    %s756 = scalar_lea.sflag [#allocation3], 1
    %757 = vsyncpa %s756, 1

</llo_original>
